<compile_context>
chip_gen: v6e
topology: v6e:2x2x1
jax: 0.10.0
libtpu: 0.0.40
codegen_flags: <defaults>
</compile_context>

<pallas_src>
import jax
import jax.numpy as jnp
from jax.experimental import pallas as pl
from jax.experimental.pallas import tpu as pltpu

BN_EPS = 1e-5


def _round_up(n, m):
    return ((n + m - 1) // m) * m


def _mlp_kernel(x_ref,
                w1_ref, b1_ref,
                w2_ref, b2_ref,
                w3_ref, b3_ref,
                wo_ref, bo_ref,
                o_ref):
    """Whole (BN-folded) forward pass for one batch tile, entirely in VMEM."""

    def lin(h, w_ref, b_ref):
        # bf16 MXU inputs, f32 accumulation; bias add + ReLU stay in f32.
        return jnp.dot(h.astype(w_ref.dtype), w_ref[...],
                       preferred_element_type=jnp.float32) + b_ref[...]

    h = x_ref[...]                              # bf16 tile from HBM
    h = jnp.maximum(lin(h, w1_ref, b1_ref), 0.0)
    h = jnp.maximum(lin(h, w2_ref, b2_ref), 0.0)
    # dropout -> identity (eval)
    h = jnp.maximum(lin(h, w3_ref, b3_ref), 0.0)
    # dropout -> identity (eval)
    out = lin(h, wo_ref, bo_ref)
    o_ref[...] = out.astype(o_ref.dtype)


def init_params(key, num_feature, num_class, dtype=jnp.float32):
    """Deterministic synthetic parameters matching the PyTorch module's shapes."""
    dims = [(num_feature, 512), (512, 128), (128, 64), (64, num_class)]
    params = {}
    keys = jax.random.split(key, 2 * len(dims) + 6)
    ki = 0
    for li, (din, dout) in enumerate(dims, start=1):
        name = f"l{li}" if li < 4 else "out"
        # weights stored as (in, out) == PyTorch (out, in) transposed
        params[f"w_{name}"] = (jax.random.normal(keys[ki], (din, dout), dtype)
                               * (1.0 / jnp.sqrt(din))); ki += 1
        params[f"b_{name}"] = (jax.random.normal(keys[ki], (1, dout), dtype) * 0.01); ki += 1
    for li, d in zip((1, 2, 3), (512, 128, 64)):
        params[f"bn{li}_gamma"] = jnp.ones((1, d), dtype)
        params[f"bn{li}_beta"] = jnp.zeros((1, d), dtype)
        params[f"bn{li}_mean"] = jax.random.normal(keys[ki], (1, d), dtype) * 0.1; ki += 1
        params[f"bn{li}_var"] = jnp.abs(jax.random.normal(keys[ki], (1, d), dtype)) + 0.5; ki += 1
    return params


def _fold_bn(w, b, gamma, beta, mean, var):
    """Fold eval-mode BatchNorm1d into the preceding Linear (all f32)."""
    scale = gamma.astype(jnp.float32) * jax.lax.rsqrt(var.astype(jnp.float32) + BN_EPS)
    w_f = w.astype(jnp.float32) * scale          # (din, dout) * (1, dout)
    b_f = (b.astype(jnp.float32) - mean.astype(jnp.float32)) * scale + beta.astype(jnp.float32)
    return w_f, b_f


def multiclass_forward(x, params, *, tile_b=None):
    B, F = x.shape
    num_class = params["w_out"].shape[1]

    # ---- fold BN into the three hidden linears (f32) ----
    w1, b1 = _fold_bn(params["w_l1"], params["b_l1"], params["bn1_gamma"],
                      params["bn1_beta"], params["bn1_mean"], params["bn1_var"])
    w2, b2 = _fold_bn(params["w_l2"], params["b_l2"], params["bn2_gamma"],
                      params["bn2_beta"], params["bn2_mean"], params["bn2_var"])
    w3, b3 = _fold_bn(params["w_l3"], params["b_l3"], params["bn3_gamma"],
                      params["bn3_beta"], params["bn3_mean"], params["bn3_var"])
    wo = params["w_out"].astype(jnp.float32)
    bo = params["b_out"].astype(jnp.float32)

    # ---- lane padding: F and num_class up to multiples of 128 ----
    F_pad = _round_up(F, 128)
    C_pad = _round_up(num_class, 128)
    w1 = jnp.pad(w1, ((0, F_pad - F), (0, 0)))
    wo = jnp.pad(wo, ((0, 0), (0, C_pad - num_class)))
    bo = jnp.pad(bo, ((0, 0), (0, C_pad - num_class)))

    # ---- batch tiling (multiple of 8; bounded so VMEM stays small on v7x) ----
    if tile_b is None:
        tile_b = min(512, _round_up(B, 8))
    tile_b = max(8, _round_up(tile_b, 8))
    B_pad = _round_up(B, tile_b)

    # x streamed as bf16 (halves the double-buffered input tile bytes)
    x_p = jnp.pad(x.astype(jnp.bfloat16), ((0, B_pad - B), (0, F_pad - F)))

    # MXU operands cast once; biases stay f32
    w1, w2, w3, wo = (w.astype(jnp.bfloat16) for w in (w1, w2, w3, wo))

    args = [x_p, w1, b1, w2, b2, w3, b3, wo, bo]

    # x is tiled along the batch axis; every parameter is replicated per tile.
    in_specs = [pl.BlockSpec((tile_b, F_pad), lambda i: (i, 0))]
    for p in args[1:]:
        in_specs.append(pl.BlockSpec(p.shape, lambda i, nd=p.ndim: (0,) * nd))

    out_spec = pl.BlockSpec((tile_b, C_pad), lambda i: (i, 0))

    out = pl.pallas_call(
        _mlp_kernel,
        out_shape=jax.ShapeDtypeStruct((B_pad, C_pad), x.dtype),
        grid_spec=pltpu.PrefetchScalarGridSpec(
            num_scalar_prefetch=0,
            grid=(B_pad // tile_b,),
            in_specs=in_specs,
            out_specs=out_spec,
        ),
        compiler_params=pltpu.CompilerParams(
            dimension_semantics=("parallel",)),
    )(*args)

    return out[:B, :num_class]


def reference_forward(x, params):
    """Pure-JAX f32 reference of the same eval-mode forward."""
    h = x.astype(jnp.float32)

    def blk(h, w, b, g, be, m, v):
        h = h @ w + b
        h = (h - m) * jax.lax.rsqrt(v + BN_EPS) * g + be
        return jnp.maximum(h, 0.0)

    h = blk(h, params["w_l1"], params["b_l1"], params["bn1_gamma"],
            params["bn1_beta"], params["bn1_mean"], params["bn1_var"])
    h = blk(h, params["w_l2"], params["b_l2"], params["bn2_gamma"],
            params["bn2_beta"], params["bn2_mean"], params["bn2_var"])
    h = blk(h, params["w_l3"], params["b_l3"], params["bn3_gamma"],
            params["bn3_beta"], params["bn3_mean"], params["bn3_var"])
    return (h @ params["w_out"] + params["b_out"]).astype(x.dtype)


if __name__ == "__main__":
    B, NUM_FEATURE, NUM_CLASS = 16, 32, 8

    key = jax.random.PRNGKey(0)
    k_x, k_p = jax.random.split(key)
    x = jax.random.normal(k_x, (B, NUM_FEATURE), jnp.float32)
    params = init_params(k_p, NUM_FEATURE, NUM_CLASS)

    # tile_b=8 -> grid=(2,): exercises the pipelined / dual-TC path even at small B.
    out = multiclass_forward(x, params, tile_b=8)
    out = jax.block_until_ready(out)

    ref = reference_forward(x, params)
    assert out.shape == (B, NUM_CLASS)
    max_err = float(jnp.max(jnp.abs(out - ref)))
    # bf16 MXU inputs with f32 accumulation -> relaxed tolerance vs f32 reference.
    assert jnp.allclose(out, ref, atol=1e-1, rtol=1e-1), f"mismatch, max|err|={max_err}"

    print("KERNEL_OK")
</pallas_src>

<mosaic_0001>
module attributes {stable_mosaic.version = 11 : i64} {
  func.func @_mlp_kernel(%arg0: i32, %arg1: memref<8x128xbf16, #tpu.memory_space<vmem>>, %arg2: memref<128x512xbf16, #tpu.memory_space<vmem>>, %arg3: memref<1x512xf32, #tpu.memory_space<vmem>>, %arg4: memref<512x128xbf16, #tpu.memory_space<vmem>>, %arg5: memref<1x128xf32, #tpu.memory_space<vmem>>, %arg6: memref<128x64xbf16, #tpu.memory_space<vmem>>, %arg7: memref<1x64xf32, #tpu.memory_space<vmem>>, %arg8: memref<64x128xbf16, #tpu.memory_space<vmem>>, %arg9: memref<1x128xf32, #tpu.memory_space<vmem>>, %arg10: memref<8x128xf32, #tpu.memory_space<vmem>>) attributes {dimension_semantics = [#tpu.dimension_semantics<parallel>], iteration_bounds = array<i64: 2>, scalar_prefetch = 0 : i64, scratch_operands = 0 : i64, tpu.core_type = #tpu.core_type<tc>, window_params = [{transform_indices = @transform_0, window_bounds = array<i64: 8, 128>}, {pipeline_mode = #tpu.pipeline_mode<synchronous>, transform_indices = @transform_1, window_bounds = array<i64: 128, 512>}, {pipeline_mode = #tpu.pipeline_mode<synchronous>, transform_indices = @transform_2, window_bounds = array<i64: 1, 512>}, {pipeline_mode = #tpu.pipeline_mode<synchronous>, transform_indices = @transform_3, window_bounds = array<i64: 512, 128>}, {pipeline_mode = #tpu.pipeline_mode<synchronous>, transform_indices = @transform_4, window_bounds = array<i64: 1, 128>}, {pipeline_mode = #tpu.pipeline_mode<synchronous>, transform_indices = @transform_5, window_bounds = array<i64: 128, 64>}, {pipeline_mode = #tpu.pipeline_mode<synchronous>, transform_indices = @transform_6, window_bounds = array<i64: 1, 64>}, {pipeline_mode = #tpu.pipeline_mode<synchronous>, transform_indices = @transform_7, window_bounds = array<i64: 64, 128>}, {pipeline_mode = #tpu.pipeline_mode<synchronous>, transform_indices = @transform_8, window_bounds = array<i64: 1, 128>}, {transform_indices = @transform_9, window_bounds = array<i64: 8, 128>}]} {
    %c0 = arith.constant 0 : index
    %c0_0 = arith.constant 0 : index
    %0 = vector.load %arg1[%c0, %c0_0] : memref<8x128xbf16, #tpu.memory_space<vmem>>, vector<8x128xbf16>
    %c0_1 = arith.constant 0 : index
    %c0_2 = arith.constant 0 : index
    %1 = vector.load %arg2[%c0_1, %c0_2] : memref<128x512xbf16, #tpu.memory_space<vmem>>, vector<128x512xbf16>
    %cst = arith.constant dense<0.000000e+00> : vector<8x512xf32>
    %2 = tpu.matmul %0, %1, %cst {dimension_numbers = #tpu.dot_dimension_numbers<[1], [0], [0], [1], [0, 0, 1, 1], [], []>} : vector<8x128xbf16>, vector<128x512xbf16>, vector<8x512xf32> -> vector<8x512xf32>
    %c0_3 = arith.constant 0 : index
    %c0_4 = arith.constant 0 : index
    %3 = vector.load %arg3[%c0_3, %c0_4] : memref<1x512xf32, #tpu.memory_space<vmem>>, vector<1x512xf32>
    %4 = vector.broadcast %3 : vector<1x512xf32> to vector<8x512xf32>
    %5 = arith.addf %2, %4 : vector<8x512xf32>
    %cst_5 = arith.constant 0.000000e+00 : f32
    %6 = vector.broadcast %cst_5 : f32 to vector<8x512xf32>
    %7 = arith.maximumf %5, %6 : vector<8x512xf32>
    %8 = arith.truncf %7 : vector<8x512xf32> to vector<8x512xbf16>
    %c0_6 = arith.constant 0 : index
    %c0_7 = arith.constant 0 : index
    %9 = vector.load %arg4[%c0_6, %c0_7] : memref<512x128xbf16, #tpu.memory_space<vmem>>, vector<512x128xbf16>
    %cst_8 = arith.constant dense<0.000000e+00> : vector<8x128xf32>
    %10 = tpu.matmul %8, %9, %cst_8 {dimension_numbers = #tpu.dot_dimension_numbers<[1], [0], [0], [1], [0, 0, 1, 1], [], []>} : vector<8x512xbf16>, vector<512x128xbf16>, vector<8x128xf32> -> vector<8x128xf32>
    %c0_9 = arith.constant 0 : index
    %c0_10 = arith.constant 0 : index
    %11 = vector.load %arg5[%c0_9, %c0_10] : memref<1x128xf32, #tpu.memory_space<vmem>>, vector<1x128xf32>
    %12 = vector.broadcast %11 : vector<1x128xf32> to vector<8x128xf32>
    %13 = arith.addf %10, %12 : vector<8x128xf32>
    %cst_11 = arith.constant 0.000000e+00 : f32
    %14 = vector.broadcast %cst_11 : f32 to vector<8x128xf32>
    %15 = arith.maximumf %13, %14 : vector<8x128xf32>
    %16 = arith.truncf %15 : vector<8x128xf32> to vector<8x128xbf16>
    %c0_12 = arith.constant 0 : index
    %c0_13 = arith.constant 0 : index
    %17 = vector.load %arg6[%c0_12, %c0_13] : memref<128x64xbf16, #tpu.memory_space<vmem>>, vector<128x64xbf16>
    %cst_14 = arith.constant dense<0.000000e+00> : vector<8x64xf32>
    %18 = tpu.matmul %16, %17, %cst_14 {dimension_numbers = #tpu.dot_dimension_numbers<[1], [0], [0], [1], [0, 0, 1, 1], [], []>} : vector<8x128xbf16>, vector<128x64xbf16>, vector<8x64xf32> -> vector<8x64xf32>
    %c0_15 = arith.constant 0 : index
    %c0_16 = arith.constant 0 : index
    %19 = vector.load %arg7[%c0_15, %c0_16] : memref<1x64xf32, #tpu.memory_space<vmem>>, vector<1x64xf32>
    %20 = vector.broadcast %19 : vector<1x64xf32> to vector<8x64xf32>
    %21 = arith.addf %18, %20 : vector<8x64xf32>
    %cst_17 = arith.constant 0.000000e+00 : f32
    %22 = vector.broadcast %cst_17 : f32 to vector<8x64xf32>
    %23 = arith.maximumf %21, %22 : vector<8x64xf32>
    %24 = arith.truncf %23 : vector<8x64xf32> to vector<8x64xbf16>
    %c0_18 = arith.constant 0 : index
    %c0_19 = arith.constant 0 : index
    %25 = vector.load %arg8[%c0_18, %c0_19] : memref<64x128xbf16, #tpu.memory_space<vmem>>, vector<64x128xbf16>
    %cst_20 = arith.constant dense<0.000000e+00> : vector<8x128xf32>
    %26 = tpu.matmul %24, %25, %cst_20 {dimension_numbers = #tpu.dot_dimension_numbers<[1], [0], [0], [1], [0, 0, 1, 1], [], []>} : vector<8x64xbf16>, vector<64x128xbf16>, vector<8x128xf32> -> vector<8x128xf32>
    %c0_21 = arith.constant 0 : index
    %c0_22 = arith.constant 0 : index
    %27 = vector.load %arg9[%c0_21, %c0_22] : memref<1x128xf32, #tpu.memory_space<vmem>>, vector<1x128xf32>
    %28 = vector.broadcast %27 : vector<1x128xf32> to vector<8x128xf32>
    %29 = arith.addf %26, %28 : vector<8x128xf32>
    %c0_23 = arith.constant 0 : index
    %c0_24 = arith.constant 0 : index
    %30 = vector.load %arg10[%c0_23, %c0_24] : memref<8x128xf32, #tpu.memory_space<vmem>>, vector<8x128xf32>
    tpu.vector_store %arg10[%c0_23, %c0_24], %29 {strides = array<i32>} : memref<8x128xf32, #tpu.memory_space<vmem>>, vector<8x128xf32>,
    return
  }
  func.func @transform_0(%arg0: i32) -> (i32, i32) {
    %c0_i32 = arith.constant 0 : i32
    %c0_i32_0 = arith.constant 0 : i32
    return %arg0, %c0_i32 : i32, i32
  }
  func.func @transform_1(%arg0: i32) -> (i32, i32) {
    %c0_i32 = arith.constant 0 : i32
    %c0_i32_0 = arith.constant 0 : i32
    %c0_i32_1 = arith.constant 0 : i32
    return %c0_i32, %c0_i32_0 : i32, i32
  }
  func.func @transform_2(%arg0: i32) -> (i32, i32) {
    %c0_i32 = arith.constant 0 : i32
    %c0_i32_0 = arith.constant 0 : i32
    %c0_i32_1 = arith.constant 0 : i32
    return %c0_i32, %c0_i32_0 : i32, i32
  }
  func.func @transform_3(%arg0: i32) -> (i32, i32) {
    %c0_i32 = arith.constant 0 : i32
    %c0_i32_0 = arith.constant 0 : i32
    %c0_i32_1 = arith.constant 0 : i32
    return %c0_i32, %c0_i32_0 : i32, i32
  }
  func.func @transform_4(%arg0: i32) -> (i32, i32) {
    %c0_i32 = arith.constant 0 : i32
    %c0_i32_0 = arith.constant 0 : i32
    %c0_i32_1 = arith.constant 0 : i32
    return %c0_i32, %c0_i32_0 : i32, i32
  }
  func.func @transform_5(%arg0: i32) -> (i32, i32) {
    %c0_i32 = arith.constant 0 : i32
    %c0_i32_0 = arith.constant 0 : i32
    %c0_i32_1 = arith.constant 0 : i32
    return %c0_i32, %c0_i32_0 : i32, i32
  }
  func.func @transform_6(%arg0: i32) -> (i32, i32) {
    %c0_i32 = arith.constant 0 : i32
    %c0_i32_0 = arith.constant 0 : i32
    %c0_i32_1 = arith.constant 0 : i32
    return %c0_i32, %c0_i32_0 : i32, i32
  }
  func.func @transform_7(%arg0: i32) -> (i32, i32) {
    %c0_i32 = arith.constant 0 : i32
    %c0_i32_0 = arith.constant 0 : i32
    %c0_i32_1 = arith.constant 0 : i32
    return %c0_i32, %c0_i32_0 : i32, i32
  }
  func.func @transform_8(%arg0: i32) -> (i32, i32) {
    %c0_i32 = arith.constant 0 : i32
    %c0_i32_0 = arith.constant 0 : i32
    %c0_i32_1 = arith.constant 0 : i32
    return %c0_i32, %c0_i32_0 : i32, i32
  }
  func.func @transform_9(%arg0: i32) -> (i32, i32) {
    %c0_i32 = arith.constant 0 : i32
    %c0_i32_0 = arith.constant 0 : i32
    return %arg0, %c0_i32 : i32, i32
  }
}

</mosaic_0001>

<llo_original>
// kernel: tpu_custom_call.1
$region0: #{tpu_custom_call.1}
  #allocation0 [shape = 'u32[]', space=smem, size = 0x4, offset = 0x4, fixed_abs, tag = 'smem constant byte address 0x4 - core index']
  #allocation1 [shape = 'u32[144,128]{1,0:T(1,128)}', space=vmem, size = 0x12000, scoped, tag = 'internal scratch']
  %s0 = inlined_call_operand.vmem [shape: bf16[16,128], index: 0, kind: input, shape index: {}]
  %s1 = inlined_call_operand.hbm [shape: bf16[128,512], index: 1, kind: input, shape index: {}]
  %s2 = inlined_call_operand.vmem [shape: f32[1,512], index: 2, kind: input, shape index: {}]
  %s3 = inlined_call_operand.hbm [shape: bf16[512,128], index: 3, kind: input, shape index: {}]
  %s4 = inlined_call_operand.vmem [shape: f32[1,128], index: 4, kind: input, shape index: {}]
  %s5 = inlined_call_operand.vmem [shape: bf16[128,64], index: 5, kind: input, shape index: {}]
  %s6 = inlined_call_operand.vmem [shape: f32[1,64], index: 6, kind: input, shape index: {}]
  %s7 = inlined_call_operand.vmem [shape: bf16[64,128], index: 7, kind: input, shape index: {}]
  %s8 = inlined_call_operand.vmem [shape: f32[1,128], index: 8, kind: input, shape index: {}]
  %s9 = inlined_call_operand.hbm [shape: f32[16,128], index: 9, kind: output, shape index: {}]
  %s10 = sld [smem:[#allocation0]]
  $region77: #{tpu_custom_call.1} parent=0
    _
  %s12 = ssub.s32 1, %s10
  %s13 = scalar_select 0, %s12, %s10
  $region1: #{tpu_custom_call.1} parent=0
    #allocation2 [shape = 'u8[131072]{0}', space=vmem, size = 0x20000, scoped, tag = 'input window, operand 1, single buffered']
    #allocation3 [shape = 's32[2]{0}', space=sflag, size = 0x8, scoped, tag = 'scoped memory for tpu_custom_call.1']
    #allocation4 [shape = 's32[2]{0}', space=sflag, size = 0x8, scoped, tag = 'scoped memory for tpu_custom_call.1']
    #allocation5 [shape = 'u8[131072]{0}', space=vmem, size = 0x20000, scoped, tag = 'input window, operand 3, single buffered']
    #allocation6 [shape = 's32[1]{0}', space=sflag, size = 0x4, scoped, tag = 'scoped memory for tpu_custom_call.1']
    #allocation7 [shape = 'u8[8192]{0}', space=vmem, size = 0x2000, scoped, tag = 'output window, operand 0']
    %14 = vsyncpa [#allocation3], 0
    %15 = vsyncpa [#allocation6], 0
    %16 = vsyncpa [#allocation4], 0
    %s17 = scalar_lea.sflag [#allocation4], 1
    %18 = vsyncpa %s17, 0
    loop: start=0, step=1, limit=4
    $region2: #{tpu_custom_call.1} parent=1 // loop_pre_header
      _
    $region3: #{tpu_custom_call.1} parent=1 // loop_header
      %s20 = sphi 0, %s24
      %p21 = scmp.ge.s32.totalorder %s20, 4
      %s30 = sphi 0, %s32
      %s33 = sphi 0, %s30
      %s34 = sphi 0, %s33
      %s50 = sphi 0, %s34
      %s54 = sphi 0, %s54
      %s56 = sphi 0, %s54
      %s57 = sphi 0, %s56
      %s71 = sphi 0, %s57
      %s75 = sphi 0, %s75
      %s77 = sphi 0, %s75
      %s78 = sphi 0, %s77
      %s92 = sphi 0, %s78
      %s96 = sphi 0, %s96
      %s98 = sphi 0, %s96
      %s99 = sphi 0, %s98
      %s113 = sphi 0, %s99
      %s117 = sphi 0, %s117
      %s119 = sphi 0, %s117
      %s120 = sphi 0, %s119
      %s134 = sphi 0, %s120
      %s138 = sphi 0, %s138
      %s140 = sphi 0, %s138
      %s141 = sphi 0, %s140
      %s155 = sphi 0, %s141
      %s159 = sphi 0, %s159
      %s161 = sphi 0, %s159
      %s162 = sphi 0, %s161
      %s176 = sphi 0, %s162
      %s180 = sphi 0, %s180
      %s182 = sphi 0, %s180
      %s183 = sphi 0, %s182
      %s197 = sphi 0, %s183
      %s201 = sphi 0, %s201
      %s203 = sphi 0, %s201
      %s204 = sphi 0, %s203
      %s218 = sphi 0, %s204
      %s224 = sphi 0, %s226
      %s227 = sphi 0, %s224
      %s228 = sphi 0, %s227
      %s244 = sphi 0, %s228
    $region4: #{tpu_custom_call.1} parent=1 // loop_header_branch
      %23 = sbr.rel (%p21) target = $region8
    $region5: #{tpu_custom_call.1} parent=1 // loop_body
      %s25 = ssub.s32 %s20, 1
      %s26 = ssub.s32 %s20, 2
      %s27 = sadd.s32 %s20, 1
      %s28 = ssub.s32 %s20, %s27
      %p29 = scmp.eq.s32.totalorder %s28, 0
      %s31 = sadd.s32 %s30, 1
      %s32 = scalar_select %p29, %s30, %s31
      %p35 = pneg %p29
      %p36 = scmp.eq.s32.totalorder %s20, 1
      %p37 = por %p35, %p36
      %p38 = scmp.ne.s32.totalorder %s30, %s33
      %p39 = scmp.eq.s32.totalorder %s20, 0
      %p40 = por %p38, %p39
      %p41 = scmp.ne.s32.totalorder %s30, %s33
      %p42 = scmp.eq.s32.totalorder %s25, 1
      %p43 = por %p41, %p42
      %p44 = scmp.ne.s32.totalorder %s33, %s34
      %p45 = scmp.eq.s32.totalorder %s25, 0
      %p46 = por %p44, %p45
      %p47 = scmp.ne.s32.totalorder %s33, %s34
      %p48 = scmp.eq.s32.totalorder %s26, 1
      %p49 = por %p47, %p48
      %p51 = scmp.ne.s32.totalorder %s34, %s50
      %p52 = scmp.eq.s32.totalorder %s26, 0
      %p53 = por %p51, %p52
      %s55 = sadd.s32 %s54, 1
      %p58 = scmp.eq.s32.totalorder %s20, 1
      %p59 = scmp.ne.s32.totalorder %s54, %s56
      %p60 = scmp.eq.s32.totalorder %s20, 0
      %p61 = por %p59, %p60
      %p62 = scmp.ne.s32.totalorder %s54, %s56
      %p63 = scmp.eq.s32.totalorder %s25, 1
      %p64 = por %p62, %p63
      %p65 = scmp.ne.s32.totalorder %s56, %s57
      %p66 = scmp.eq.s32.totalorder %s25, 0
      %p67 = por %p65, %p66
      %p68 = scmp.ne.s32.totalorder %s56, %s57
      %p69 = scmp.eq.s32.totalorder %s26, 1
      %p70 = por %p68, %p69
      %p72 = scmp.ne.s32.totalorder %s57, %s71
      %p73 = scmp.eq.s32.totalorder %s26, 0
      %p74 = por %p72, %p73
      %s76 = sadd.s32 %s75, 1
      %p79 = scmp.eq.s32.totalorder %s20, 1
      %p80 = scmp.ne.s32.totalorder %s75, %s77
      %p81 = scmp.eq.s32.totalorder %s20, 0
      %p82 = por %p80, %p81
      %p83 = scmp.ne.s32.totalorder %s75, %s77
      %p84 = scmp.eq.s32.totalorder %s25, 1
      %p85 = por %p83, %p84
      %p86 = scmp.ne.s32.totalorder %s77, %s78
      %p87 = scmp.eq.s32.totalorder %s25, 0
      %p88 = por %p86, %p87
      %p89 = scmp.ne.s32.totalorder %s77, %s78
      %p90 = scmp.eq.s32.totalorder %s26, 1
      %p91 = por %p89, %p90
      %p93 = scmp.ne.s32.totalorder %s78, %s92
      %p94 = scmp.eq.s32.totalorder %s26, 0
      %p95 = por %p93, %p94
      %s97 = sadd.s32 %s96, 1
      %p100 = scmp.eq.s32.totalorder %s20, 1
      %p101 = scmp.ne.s32.totalorder %s96, %s98
      %p102 = scmp.eq.s32.totalorder %s20, 0
      %p103 = por %p101, %p102
      %p104 = scmp.ne.s32.totalorder %s96, %s98
      %p105 = scmp.eq.s32.totalorder %s25, 1
      %p106 = por %p104, %p105
      %p107 = scmp.ne.s32.totalorder %s98, %s99
      %p108 = scmp.eq.s32.totalorder %s25, 0
      %p109 = por %p107, %p108
      %p110 = scmp.ne.s32.totalorder %s98, %s99
      %p111 = scmp.eq.s32.totalorder %s26, 1
      %p112 = por %p110, %p111
      %p114 = scmp.ne.s32.totalorder %s99, %s113
      %p115 = scmp.eq.s32.totalorder %s26, 0
      %p116 = por %p114, %p115
      %s118 = sadd.s32 %s117, 1
      %p121 = scmp.eq.s32.totalorder %s20, 1
      %p122 = scmp.ne.s32.totalorder %s117, %s119
      %p123 = scmp.eq.s32.totalorder %s20, 0
      %p124 = por %p122, %p123
      %p125 = scmp.ne.s32.totalorder %s117, %s119
      %p126 = scmp.eq.s32.totalorder %s25, 1
      %p127 = por %p125, %p126
      %p128 = scmp.ne.s32.totalorder %s119, %s120
      %p129 = scmp.eq.s32.totalorder %s25, 0
      %p130 = por %p128, %p129
      %p131 = scmp.ne.s32.totalorder %s119, %s120
      %p132 = scmp.eq.s32.totalorder %s26, 1
      %p133 = por %p131, %p132
      %p135 = scmp.ne.s32.totalorder %s120, %s134
      %p136 = scmp.eq.s32.totalorder %s26, 0
      %p137 = por %p135, %p136
      %s139 = sadd.s32 %s138, 1
      %p142 = scmp.eq.s32.totalorder %s20, 1
      %p143 = scmp.ne.s32.totalorder %s138, %s140
      %p144 = scmp.eq.s32.totalorder %s20, 0
      %p145 = por %p143, %p144
      %p146 = scmp.ne.s32.totalorder %s138, %s140
      %p147 = scmp.eq.s32.totalorder %s25, 1
      %p148 = por %p146, %p147
      %p149 = scmp.ne.s32.totalorder %s140, %s141
      %p150 = scmp.eq.s32.totalorder %s25, 0
      %p151 = por %p149, %p150
      %p152 = scmp.ne.s32.totalorder %s140, %s141
      %p153 = scmp.eq.s32.totalorder %s26, 1
      %p154 = por %p152, %p153
      %p156 = scmp.ne.s32.totalorder %s141, %s155
      %p157 = scmp.eq.s32.totalorder %s26, 0
      %p158 = por %p156, %p157
      %s160 = sadd.s32 %s159, 1
      %p163 = scmp.eq.s32.totalorder %s20, 1
      %p164 = scmp.ne.s32.totalorder %s159, %s161
      %p165 = scmp.eq.s32.totalorder %s20, 0
      %p166 = por %p164, %p165
      %p167 = scmp.ne.s32.totalorder %s159, %s161
      %p168 = scmp.eq.s32.totalorder %s25, 1
      %p169 = por %p167, %p168
      %p170 = scmp.ne.s32.totalorder %s161, %s162
      %p171 = scmp.eq.s32.totalorder %s25, 0
      %p172 = por %p170, %p171
      %p173 = scmp.ne.s32.totalorder %s161, %s162
      %p174 = scmp.eq.s32.totalorder %s26, 1
      %p175 = por %p173, %p174
      %p177 = scmp.ne.s32.totalorder %s162, %s176
      %p178 = scmp.eq.s32.totalorder %s26, 0
      %p179 = por %p177, %p178
      %s181 = sadd.s32 %s180, 1
      %p184 = scmp.eq.s32.totalorder %s20, 1
      %p185 = scmp.ne.s32.totalorder %s180, %s182
      %p186 = scmp.eq.s32.totalorder %s20, 0
      %p187 = por %p185, %p186
      %p188 = scmp.ne.s32.totalorder %s180, %s182
      %p189 = scmp.eq.s32.totalorder %s25, 1
      %p190 = por %p188, %p189
      %p191 = scmp.ne.s32.totalorder %s182, %s183
      %p192 = scmp.eq.s32.totalorder %s25, 0
      %p193 = por %p191, %p192
      %p194 = scmp.ne.s32.totalorder %s182, %s183
      %p195 = scmp.eq.s32.totalorder %s26, 1
      %p196 = por %p194, %p195
      %p198 = scmp.ne.s32.totalorder %s183, %s197
      %p199 = scmp.eq.s32.totalorder %s26, 0
      %p200 = por %p198, %p199
      %s202 = sadd.s32 %s201, 1
      %p205 = scmp.eq.s32.totalorder %s20, 1
      %p206 = scmp.ne.s32.totalorder %s201, %s203
      %p207 = scmp.eq.s32.totalorder %s20, 0
      %p208 = por %p206, %p207
      %p209 = scmp.ne.s32.totalorder %s201, %s203
      %p210 = scmp.eq.s32.totalorder %s25, 1
      %p211 = por %p209, %p210
      %p212 = scmp.ne.s32.totalorder %s203, %s204
      %p213 = scmp.eq.s32.totalorder %s25, 0
      %p214 = por %p212, %p213
      %p215 = scmp.ne.s32.totalorder %s203, %s204
      %p216 = scmp.eq.s32.totalorder %s26, 1
      %p217 = por %p215, %p216
      %p219 = scmp.ne.s32.totalorder %s204, %s218
      %p220 = scmp.eq.s32.totalorder %s26, 0
      %p221 = por %p219, %p220
      %s222 = ssub.s32 %s20, %s27
      %p223 = scmp.eq.s32.totalorder %s222, 0
      %s225 = sadd.s32 %s224, 1
      %s226 = scalar_select %p223, %s224, %s225
      %p229 = pneg %p223
      %p230 = scmp.eq.s32.totalorder %s20, 1
      %p231 = por %p229, %p230
      %p232 = scmp.ne.s32.totalorder %s224, %s227
      %p233 = scmp.eq.s32.totalorder %s20, 0
      %p234 = por %p232, %p233
      %p235 = scmp.ne.s32.totalorder %s224, %s227
      %p236 = scmp.eq.s32.totalorder %s25, 1
      %p237 = por %p235, %p236
      %p238 = scmp.ne.s32.totalorder %s227, %s228
      %p239 = scmp.eq.s32.totalorder %s25, 0
      %p240 = por %p238, %p239
      %p241 = scmp.ne.s32.totalorder %s227, %s228
      %p242 = scmp.eq.s32.totalorder %s26, 1
      %p243 = por %p241, %p242
      %p245 = scmp.ne.s32.totalorder %s228, %s244
      %p246 = scmp.eq.s32.totalorder %s26, 0
      %p247 = por %p245, %p246
      %p248 = scmp.le.s32.totalorder 1, %s20
      %p249 = scmp.lt.s32.totalorder %s20, 3
      %p250 = pnand %p248, %p249
      %p251 = pneg %p250
      // Predicated region
      $region9: #{tpu_custom_call.1} parent=5 // pred_check
        _
      $region10: #{tpu_custom_call.1} parent=5 // pred_check_branch
        %253 = sbr.rel (%p250) target = $region12
      $region11: #{tpu_custom_call.1} parent=5 // pred_region
        %s254 = ssub.s32 %s20, 1
        // Predicated region
        $region13: #{tpu_custom_call.1} parent=11 // pred_check
          %p255 = pneg %p67
        $region14: #{tpu_custom_call.1} parent=11 // pred_check_branch
          %257 = sbr.rel (%p255) target = $region16
        $region15: #{tpu_custom_call.1} parent=11 // pred_region
          %s259 = ssub.s32 4096, 4096
          %260 = vsyncadd [#allocation3], %s259
          %s261 = sshll.u32 [#allocation2], 4
          %s262 = int_to_ptr.vmem [resolvable:$true] %s261
          %267 = dma.hbm_to_vmem [thread:$0]  %s1, 4096, %s262, [#allocation3], 256, 256, 16
        $region16: #{tpu_custom_call.1} parent=11 // pred_fallthru
          _
        // Predicated region
        $region17: #{tpu_custom_call.1} parent=11 // pred_check
          %p268 = pneg %p88
        $region18: #{tpu_custom_call.1} parent=11 // pred_check_branch
          %270 = sbr.rel (%p268) target = $region20
        $region19: #{tpu_custom_call.1} parent=11 // pred_region
          _
        $region20: #{tpu_custom_call.1} parent=11 // pred_fallthru
          _
        // Predicated region
        $region21: #{tpu_custom_call.1} parent=11 // pred_check
          %p271 = pneg %p109
        $region22: #{tpu_custom_call.1} parent=11 // pred_check_branch
          %273 = sbr.rel (%p271) target = $region24
        $region23: #{tpu_custom_call.1} parent=11 // pred_region
          %s275 = ssub.s32 4096, 4096
          %276 = vsyncadd [#allocation6], %s275
          %s277 = sshll.u32 [#allocation5], 4
          %s278 = int_to_ptr.vmem [resolvable:$true] %s277
          %283 = dma.hbm_to_vmem [thread:$0]  %s3, 4096, %s278, [#allocation6], 64, 64, 4
        $region24: #{tpu_custom_call.1} parent=11 // pred_fallthru
          _
        // Predicated region
        $region25: #{tpu_custom_call.1} parent=11 // pred_check
          %p284 = pneg %p130
        $region26: #{tpu_custom_call.1} parent=11 // pred_check_branch
          %286 = sbr.rel (%p284) target = $region28
        $region27: #{tpu_custom_call.1} parent=11 // pred_region
          _
        $region28: #{tpu_custom_call.1} parent=11 // pred_fallthru
          _
        // Predicated region
        $region29: #{tpu_custom_call.1} parent=11 // pred_check
          %p287 = pneg %p151
        $region30: #{tpu_custom_call.1} parent=11 // pred_check_branch
          %289 = sbr.rel (%p287) target = $region32
        $region31: #{tpu_custom_call.1} parent=11 // pred_region
          _
        $region32: #{tpu_custom_call.1} parent=11 // pred_fallthru
          _
        // Predicated region
        $region33: #{tpu_custom_call.1} parent=11 // pred_check
          %p290 = pneg %p172
        $region34: #{tpu_custom_call.1} parent=11 // pred_check_branch
          %292 = sbr.rel (%p290) target = $region36
        $region35: #{tpu_custom_call.1} parent=11 // pred_region
          _
        $region36: #{tpu_custom_call.1} parent=11 // pred_fallthru
          _
        // Predicated region
        $region37: #{tpu_custom_call.1} parent=11 // pred_check
          %p293 = pneg %p193
        $region38: #{tpu_custom_call.1} parent=11 // pred_check_branch
          %295 = sbr.rel (%p293) target = $region40
        $region39: #{tpu_custom_call.1} parent=11 // pred_region
          _
        $region40: #{tpu_custom_call.1} parent=11 // pred_fallthru
          _
        // Predicated region
        $region41: #{tpu_custom_call.1} parent=11 // pred_check
          %p296 = pneg %p214
        $region42: #{tpu_custom_call.1} parent=11 // pred_check_branch
          %298 = sbr.rel (%p296) target = $region44
        $region43: #{tpu_custom_call.1} parent=11 // pred_region
          _
        $region44: #{tpu_custom_call.1} parent=11 // pred_fallthru
          _
      $region12: #{tpu_custom_call.1} parent=5 // pred_fallthru
        _
      %p299 = scmp.lt.s32.totalorder %s20, 2
      // Predicated region
      $region45: #{tpu_custom_call.1} parent=5 // pred_check
        %p300 = pneg %p299
      $region46: #{tpu_custom_call.1} parent=5 // pred_check_branch
        %302 = sbr.rel (%p300) target = $region48
      $region47: #{tpu_custom_call.1} parent=5 // pred_region
        // Predicated region
        $region49: #{tpu_custom_call.1} parent=47 // pred_check
          %p303 = pneg %p40
        $region50: #{tpu_custom_call.1} parent=47 // pred_check_branch
          %305 = sbr.rel (%p303) target = $region52
        $region51: #{tpu_custom_call.1} parent=47 // pred_region
          %p306 = scmp.lt.s32.totalorder %s20, 1
          %s307 = scalar_select %p306, %s20, 1
          %s308 = smul.addr %s307, 4
          %s309 = scalar_lea.vmem %s0, %s308
        $region52: #{tpu_custom_call.1} parent=47 // pred_fallthru
          _
      $region48: #{tpu_custom_call.1} parent=5 // pred_fallthru
        _
      %p310 = scmp.le.s32.totalorder 1, %s20
      %p311 = scmp.lt.s32.totalorder %s20, 3
      %p312 = pnand %p310, %p311
      %p313 = pneg %p312
      // Predicated region
      $region53: #{tpu_custom_call.1} parent=5 // pred_check
        _
      $region54: #{tpu_custom_call.1} parent=5 // pred_check_branch
        %315 = sbr.rel (%p312) target = $region56
      $region55: #{tpu_custom_call.1} parent=5 // pred_region
        %s316 = ssub.s32 %s20, 1
        // Predicated region
        $region57: #{tpu_custom_call.1} parent=55 // pred_check
          %p317 = pneg %p67
        $region58: #{tpu_custom_call.1} parent=55 // pred_check_branch
          %319 = sbr.rel (%p317) target = $region60
        $region59: #{tpu_custom_call.1} parent=55 // pred_region
          %320 = dma.done [#allocation3], 4096
        $region60: #{tpu_custom_call.1} parent=55 // pred_fallthru
          _
        // Predicated region
        $region61: #{tpu_custom_call.1} parent=55 // pred_check
          %p321 = pneg %p109
        $region62: #{tpu_custom_call.1} parent=55 // pred_check_branch
          %323 = sbr.rel (%p321) target = $region64
        $region63: #{tpu_custom_call.1} parent=55 // pred_region
          %324 = dma.done [#allocation6], 4096
        $region64: #{tpu_custom_call.1} parent=55 // pred_fallthru
          _
        %p325 = scmp.lt.s32.totalorder %s25, 1
        %s326 = scalar_select %p325, %s25, 1
        %s327 = smul.addr %s326, 4
        %s328 = scalar_lea.vmem %s0, %s327
        %p329 = pneg %p46
        %p330 = pneg %p43
        %p331 = pneg %p67
        %p332 = pneg %p64
        %p333 = pneg %p88
        %p334 = pneg %p85
        %p335 = pneg %p109
        %p336 = pneg %p106
        %p337 = pneg %p130
        %p338 = pneg %p127
        %p339 = pneg %p151
        %p340 = pneg %p148
        %p341 = pneg %p172
        %p342 = pneg %p169
        %p343 = pneg %p193
        %p344 = pneg %p190
        %p345 = pneg %p214
        %p346 = pneg %p211
        %p347 = pneg %p240
        %p348 = pneg %p237
        %s349 = sand.u32 %s227, 1
        %s350 = scalar_lea.sflag [#allocation4], %s349
        %s351 = sand.u32 %s227, 1
        %s352 = smul.addr %s351, 8
        %s353 = scalar_lea.vmem [#allocation7], %s352
        %p354 = scmp.lt.s32.totalorder %s25, 1
        %s355 = scalar_select %p354, %s25, 1
        %s356 = smul.addr %s355, 4
        %s357 = scalar_lea.vmem %s0, %s356
        %v359 = vld [vmem:[%s357] sm:$0xf]
        %v360 = vld [vmem:[#allocation2] sm:$0xff]
        %v361 = vld [vmem:[#allocation2 + $0x8] sm:$0xff]
        %v362 = vld [vmem:[#allocation2 + $0x10] sm:$0xff]
        %v363 = vld [vmem:[#allocation2 + $0x18] sm:$0xff]
        %v364 = vld [vmem:[#allocation2 + $0x20] sm:$0xff]
        %v365 = vld [vmem:[#allocation2 + $0x28] sm:$0xff]
        %v366 = vld [vmem:[#allocation2 + $0x30] sm:$0xff]
        %v367 = vld [vmem:[#allocation2 + $0x38] sm:$0xff]
        %v368 = vld [vmem:[#allocation2 + $0x40] sm:$0xff]
        %v369 = vld [vmem:[#allocation2 + $0x48] sm:$0xff]
        %v370 = vld [vmem:[#allocation2 + $0x50] sm:$0xff]
        %v371 = vld [vmem:[#allocation2 + $0x58] sm:$0xff]
        %v372 = vld [vmem:[#allocation2 + $0x60] sm:$0xff]
        %v373 = vld [vmem:[#allocation2 + $0x68] sm:$0xff]
        %v374 = vld [vmem:[#allocation2 + $0x70] sm:$0xff]
        %v375 = vld [vmem:[#allocation2 + $0x78] sm:$0xff]
        %v376 = vld [vmem:[#allocation2 + $0x80] sm:$0xff]
        %v377 = vld [vmem:[#allocation2 + $0x88] sm:$0xff]
        %v378 = vld [vmem:[#allocation2 + $0x90] sm:$0xff]
        %v379 = vld [vmem:[#allocation2 + $0x98] sm:$0xff]
        %v380 = vld [vmem:[#allocation2 + $0xa0] sm:$0xff]
        %v381 = vld [vmem:[#allocation2 + $0xa8] sm:$0xff]
        %v382 = vld [vmem:[#allocation2 + $0xb0] sm:$0xff]
        %v383 = vld [vmem:[#allocation2 + $0xb8] sm:$0xff]
        %v384 = vld [vmem:[#allocation2 + $0xc0] sm:$0xff]
        %v385 = vld [vmem:[#allocation2 + $0xc8] sm:$0xff]
        %v386 = vld [vmem:[#allocation2 + $0xd0] sm:$0xff]
        %v387 = vld [vmem:[#allocation2 + $0xd8] sm:$0xff]
        %v388 = vld [vmem:[#allocation2 + $0xe0] sm:$0xff]
        %v389 = vld [vmem:[#allocation2 + $0xe8] sm:$0xff]
        %v390 = vld [vmem:[#allocation2 + $0xf0] sm:$0xff]
        %v391 = vld [vmem:[#allocation2 + $0xf8] sm:$0xff]
        %v392 = vld [vmem:[%s2] sm:$0xf]
        %v394 = vlaneseq
        %v395 = vshrl.u32 %v394, 7
        %v396 = vsub.s32 0, %v395
        %v397 = vrot.slane %v392, %v396
        %v398 = vlaneseq
        %v399 = vshrl.u32 %v398, 7
        %v400 = vsub.s32 1, %v399
        %v401 = vrot.slane %v392, %v400
        %v402 = vlaneseq
        %v403 = vshrl.u32 %v402, 7
        %v404 = vsub.s32 2, %v403
        %v405 = vrot.slane %v392, %v404
        %v406 = vlaneseq
        %v407 = vshrl.u32 %v406, 7
        %v408 = vsub.s32 3, %v407
        %v409 = vrot.slane %v392, %v408
        %v446 = vunpack.c.l.b16 %v360
        %v447 = vunpack.c.h.b16 %v360
        %v448 = vunpack.c.l.b16 %v361
        %v449 = vunpack.c.h.b16 %v361
        %v450 = vunpack.c.l.b16 %v362
        %v451 = vunpack.c.h.b16 %v362
        %v452 = vunpack.c.l.b16 %v363
        %v453 = vunpack.c.h.b16 %v363
        %v454 = vunpack.c.l.b16 %v364
        %v455 = vunpack.c.h.b16 %v364
        %v456 = vunpack.c.l.b16 %v365
        %v457 = vunpack.c.h.b16 %v365
        %v458 = vunpack.c.l.b16 %v366
        %v459 = vunpack.c.h.b16 %v366
        %v460 = vunpack.c.l.b16 %v367
        %v461 = vunpack.c.h.b16 %v367
        %v462 = vunpack.c.l.b16 %v368
        %v463 = vunpack.c.h.b16 %v368
        %v464 = vunpack.c.l.b16 %v369
        %v465 = vunpack.c.h.b16 %v369
        %v466 = vunpack.c.l.b16 %v370
        %v467 = vunpack.c.h.b16 %v370
        %v468 = vunpack.c.l.b16 %v371
        %v469 = vunpack.c.h.b16 %v371
        %v470 = vunpack.c.l.b16 %v372
        %v471 = vunpack.c.h.b16 %v372
        %v472 = vunpack.c.l.b16 %v373
        %v473 = vunpack.c.h.b16 %v373
        %v474 = vunpack.c.l.b16 %v374
        %v475 = vunpack.c.h.b16 %v374
        %v476 = vunpack.c.l.b16 %v375
        %v477 = vunpack.c.h.b16 %v375
        %v478 = vunpack.c.l.b16 %v376
        %v479 = vunpack.c.h.b16 %v376
        %v480 = vunpack.c.l.b16 %v377
        %v481 = vunpack.c.h.b16 %v377
        %v482 = vunpack.c.l.b16 %v378
        %v483 = vunpack.c.h.b16 %v378
        %v484 = vunpack.c.l.b16 %v379
        %v485 = vunpack.c.h.b16 %v379
        %v486 = vunpack.c.l.b16 %v380
        %v487 = vunpack.c.h.b16 %v380
        %v488 = vunpack.c.l.b16 %v381
        %v489 = vunpack.c.h.b16 %v381
        %v490 = vunpack.c.l.b16 %v382
        %v491 = vunpack.c.h.b16 %v382
        %v492 = vunpack.c.l.b16 %v383
        %v493 = vunpack.c.h.b16 %v383
        %v494 = vunpack.c.l.b16 %v384
        %v495 = vunpack.c.h.b16 %v384
        %v496 = vunpack.c.l.b16 %v385
        %v497 = vunpack.c.h.b16 %v385
        %v498 = vunpack.c.l.b16 %v386
        %v499 = vunpack.c.h.b16 %v386
        %v500 = vunpack.c.l.b16 %v387
        %v501 = vunpack.c.h.b16 %v387
        %v502 = vunpack.c.l.b16 %v388
        %v503 = vunpack.c.h.b16 %v388
        %v504 = vunpack.c.l.b16 %v389
        %v505 = vunpack.c.h.b16 %v389
        %v506 = vunpack.c.l.b16 %v390
        %v507 = vunpack.c.h.b16 %v390
        %v508 = vunpack.c.l.b16 %v391
        %v509 = vunpack.c.h.b16 %v391
        %v510 = vpack.c.b16 %v450, %v446
        %v511 = vpack.c.b16 %v451, %v447
        %v512 = vpack.c.b16 %v452, %v448
        %v513 = vpack.c.b16 %v453, %v449
        %v514 = vpack.c.b16 %v458, %v454
        %v515 = vpack.c.b16 %v459, %v455
        %v516 = vpack.c.b16 %v460, %v456
        %v517 = vpack.c.b16 %v461, %v457
        %v518 = vpack.c.b16 %v466, %v462
        %v519 = vpack.c.b16 %v467, %v463
        %v520 = vpack.c.b16 %v468, %v464
        %v521 = vpack.c.b16 %v469, %v465
        %v522 = vpack.c.b16 %v474, %v470
        %v523 = vpack.c.b16 %v475, %v471
        %v524 = vpack.c.b16 %v476, %v472
        %v525 = vpack.c.b16 %v477, %v473
        %v526 = vpack.c.b16 %v482, %v478
        %v527 = vpack.c.b16 %v483, %v479
        %v528 = vpack.c.b16 %v484, %v480
        %v529 = vpack.c.b16 %v485, %v481
        %v530 = vpack.c.b16 %v490, %v486
        %v531 = vpack.c.b16 %v491, %v487
        %v532 = vpack.c.b16 %v492, %v488
        %v533 = vpack.c.b16 %v493, %v489
        %v534 = vpack.c.b16 %v498, %v494
        %v535 = vpack.c.b16 %v499, %v495
        %v536 = vpack.c.b16 %v500, %v496
        %v537 = vpack.c.b16 %v501, %v497
        %v538 = vpack.c.b16 %v506, %v502
        %v539 = vpack.c.b16 %v507, %v503
        %v540 = vpack.c.b16 %v508, %v504
        %v541 = vpack.c.b16 %v509, %v505
        %574 = vmatprep.subr.bf16.mxu0 %v539
        %575 = vmatpush1.bf16.msra.mxu0 %v538
        %576 = vmatprep.subr.bf16.mxu0 %v535
        %577 = vmatpush1.bf16.msra.mxu0 %v534
        %578 = vmatprep.subr.bf16.mxu0 %v531
        %579 = vmatpush1.bf16.msra.mxu0 %v530
        %580 = vmatprep.subr.bf16.mxu0 %v527
        %581 = vmatpush1.bf16.msra.mxu0 %v526
        %582 = vmatprep.subr.bf16.mxu0 %v523
        %583 = vmatpush1.bf16.msra.mxu0 %v522
        %584 = vmatprep.subr.bf16.mxu0 %v519
        %585 = vmatpush1.bf16.msra.mxu0 %v518
        %586 = vmatprep.subr.bf16.mxu0 %v515
        %587 = vmatpush1.bf16.msra.mxu0 %v514
        %588 = vmatprep.subr.bf16.mxu0 %v511
        %589 = vmatpush1.bf16.msra.mxu0 %v510
        %590 = vmatprep.subr.bf16.mxu0 0
        %591 = vmatpush2.bf16.msra.mxu0 0
        %592 = vmatprep.subr.bf16.mxu0 0
        %593 = vmatpush2.bf16.msra.mxu0 0
        %594 = vmatprep.subr.bf16.mxu0 0
        %595 = vmatpush2.bf16.msra.mxu0 0
        %596 = vmatprep.subr.bf16.mxu0 0
        %597 = vmatpush2.bf16.msra.mxu0 0
        %598 = vmatprep.subr.bf16.mxu0 0
        %599 = vmatpush2.bf16.msra.mxu0 0
        %600 = vmatprep.subr.bf16.mxu0 0
        %601 = vmatpush2.bf16.msra.mxu0 0
        %602 = vmatprep.subr.bf16.mxu0 0
        %603 = vmatpush2.bf16.msra.mxu0 0
        %604 = vmatprep.subr.bf16.mxu0 0
        %605 = vmatpush2.bf16.msra.mxu0 0
        %606 = vmatprep.mubr.bf16.mxu0 0
        %607 = vmatmul.mubr.bf16.gmra.mxu0 %v359
        %v608 = vpop.f32.mrf.mxu0
        %v609 = vadd.f32 %v397, %v608
        %v610 = vpop.f32.mrf.mxu0
        %v611 = vadd.f32 %v401, %v610
        %v612 = vpop.f32.mrf.mxu0
        %v613 = vpop.f32.mrf.mxu0
        %614 = vdwg.mxu0
        %615 = vmatprep.subr.bf16.mxu0 %v541
        %616 = vmatpush1.bf16.msra.mxu0 %v540
        %617 = vmatprep.subr.bf16.mxu0 %v537
        %618 = vmatpush1.bf16.msra.mxu0 %v536
        %619 = vmatprep.subr.bf16.mxu0 %v533
        %620 = vmatpush1.bf16.msra.mxu0 %v532
        %621 = vmatprep.subr.bf16.mxu0 %v529
        %622 = vmatpush1.bf16.msra.mxu0 %v528
        %623 = vmatprep.subr.bf16.mxu0 %v525
        %624 = vmatpush1.bf16.msra.mxu0 %v524
        %625 = vmatprep.subr.bf16.mxu0 %v521
        %626 = vmatpush1.bf16.msra.mxu0 %v520
        %627 = vmatprep.subr.bf16.mxu0 %v517
        %628 = vmatpush1.bf16.msra.mxu0 %v516
        %629 = vmatprep.subr.bf16.mxu0 %v513
        %630 = vmatpush1.bf16.msra.mxu0 %v512
        %631 = vmatprep.subr.bf16.mxu0 0
        %632 = vmatpush2.bf16.msra.mxu0 0
        %633 = vmatprep.subr.bf16.mxu0 0
        %634 = vmatpush2.bf16.msra.mxu0 0
        %635 = vmatprep.subr.bf16.mxu0 0
        %636 = vmatpush2.bf16.msra.mxu0 0
        %637 = vmatprep.subr.bf16.mxu0 0
        %638 = vmatpush2.bf16.msra.mxu0 0
        %639 = vmatprep.subr.bf16.mxu0 0
        %640 = vmatpush2.bf16.msra.mxu0 0
        %641 = vmatprep.subr.bf16.mxu0 0
        %642 = vmatpush2.bf16.msra.mxu0 0
        %643 = vmatprep.subr.bf16.mxu0 0
        %644 = vmatpush2.bf16.msra.mxu0 0
        %645 = vmatprep.subr.bf16.mxu0 0
        %646 = vmatpush2.bf16.msra.mxu0 0
        %647 = vmatprep.mubr.bf16.mxu0 0
        %648 = vmatmul.mubr.bf16.gmra.mxu0 %v359
        %v649 = vpop.f32.mrf.mxu0
        %v650 = vadd.f32 %v405, %v649
        %v651 = vpop.f32.mrf.mxu0
        %v652 = vadd.f32 %v409, %v651
        %v653 = vpop.f32.mrf.mxu0
        %v654 = vpop.f32.mrf.mxu0
        %655 = vdwg.mxu0
        %v656 = vmax.f32 %v609, 0.0
        %v657 = vmax.f32 %v611, 0.0
        %v658 = vmax.f32 %v650, 0.0
        %v659 = vmax.f32 %v652, 0.0
        %v660 = vpack.c.bf16 %v656, %v656
        %v661 = vpack.c.bf16 %v657, %v657
        %v662 = vpack.c.bf16 %v658, %v658
        %v663 = vpack.c.bf16 %v659, %v659
        %v664 = vld [vmem:[#allocation5] sm:$0xf]
        %v665 = vld [vmem:[#allocation5 + $0x4] sm:$0xf]
        %v666 = vld [vmem:[#allocation5 + $0x8] sm:$0xf]
        %v667 = vld [vmem:[#allocation5 + $0xc] sm:$0xf]
        %v668 = vld [vmem:[#allocation5 + $0x10] sm:$0xf]
        %v669 = vld [vmem:[#allocation5 + $0x14] sm:$0xf]
        %v670 = vld [vmem:[#allocation5 + $0x18] sm:$0xf]
        %v671 = vld [vmem:[#allocation5 + $0x1c] sm:$0xf]
        %v672 = vld [vmem:[#allocation5 + $0x20] sm:$0xf]
        %v673 = vld [vmem:[#allocation5 + $0x24] sm:$0xf]
        %v674 = vld [vmem:[#allocation5 + $0x28] sm:$0xf]
        %v675 = vld [vmem:[#allocation5 + $0x2c] sm:$0xf]
        %v676 = vld [vmem:[#allocation5 + $0x30] sm:$0xf]
        %v677 = vld [vmem:[#allocation5 + $0x34] sm:$0xf]
        %v678 = vld [vmem:[#allocation5 + $0x38] sm:$0xf]
        %v679 = vld [vmem:[#allocation5 + $0x3c] sm:$0xf]
        %v680 = vld [vmem:[#allocation5 + $0x40] sm:$0xf]
        %v681 = vld [vmem:[#allocation5 + $0x44] sm:$0xf]
        %v682 = vld [vmem:[#allocation5 + $0x48] sm:$0xf]
        %v683 = vld [vmem:[#allocation5 + $0x4c] sm:$0xf]
        %v684 = vld [vmem:[#allocation5 + $0x50] sm:$0xf]
        %v685 = vld [vmem:[#allocation5 + $0x54] sm:$0xf]
        %v686 = vld [vmem:[#allocation5 + $0x58] sm:$0xf]
        %v687 = vld [vmem:[#allocation5 + $0x5c] sm:$0xf]
        %v688 = vld [vmem:[#allocation5 + $0x60] sm:$0xf]
        %v689 = vld [vmem:[#allocation5 + $0x64] sm:$0xf]
        %v690 = vld [vmem:[#allocation5 + $0x68] sm:$0xf]
        %v691 = vld [vmem:[#allocation5 + $0x6c] sm:$0xf]
        %v692 = vld [vmem:[#allocation5 + $0x70] sm:$0xf]
        %v693 = vld [vmem:[#allocation5 + $0x74] sm:$0xf]
        %v694 = vld [vmem:[#allocation5 + $0x78] sm:$0xf]
        %v695 = vld [vmem:[#allocation5 + $0x7c] sm:$0xf]
        %v696 = vld [vmem:[#allocation5 + $0x80] sm:$0xf]
        %v697 = vld [vmem:[#allocation5 + $0x84] sm:$0xf]
        %v698 = vld [vmem:[#allocation5 + $0x88] sm:$0xf]
        %v699 = vld [vmem:[#allocation5 + $0x8c] sm:$0xf]
        %v700 = vld [vmem:[#allocation5 + $0x90] sm:$0xf]
        %v701 = vld [vmem:[#allocation5 + $0x94] sm:$0xf]
        %v702 = vld [vmem:[#allocation5 + $0x98] sm:$0xf]
        %v703 = vld [vmem:[#allocation5 + $0x9c] sm:$0xf]
        %v704 = vld [vmem:[#allocation5 + $0xa0] sm:$0xf]
        %v705 = vld [vmem:[#allocation5 + $0xa4] sm:$0xf]
        %v706 = vld [vmem:[#allocation5 + $0xa8] sm:$0xf]
        %v707 = vld [vmem:[#allocation5 + $0xac] sm:$0xf]
        %v708 = vld [vmem:[#allocation5 + $0xb0] sm:$0xf]
        %v709 = vld [vmem:[#allocation5 + $0xb4] sm:$0xf]
        %v710 = vld [vmem:[#allocation5 + $0xb8] sm:$0xf]
        %v711 = vld [vmem:[#allocation5 + $0xbc] sm:$0xf]
        %v712 = vld [vmem:[#allocation5 + $0xc0] sm:$0xf]
        %v713 = vld [vmem:[#allocation5 + $0xc4] sm:$0xf]
        %v714 = vld [vmem:[#allocation5 + $0xc8] sm:$0xf]
        %v715 = vld [vmem:[#allocation5 + $0xcc] sm:$0xf]
        %v716 = vld [vmem:[#allocation5 + $0xd0] sm:$0xf]
        %v717 = vld [vmem:[#allocation5 + $0xd4] sm:$0xf]
        %v718 = vld [vmem:[#allocation5 + $0xd8] sm:$0xf]
        %v719 = vld [vmem:[#allocation5 + $0xdc] sm:$0xf]
        %v720 = vld [vmem:[#allocation5 + $0xe0] sm:$0xf]
        %v721 = vld [vmem:[#allocation5 + $0xe4] sm:$0xf]
        %v722 = vld [vmem:[#allocation5 + $0xe8] sm:$0xf]
        %v723 = vld [vmem:[#allocation5 + $0xec] sm:$0xf]
        %v724 = vld [vmem:[#allocation5 + $0xf0] sm:$0xf]
        %v725 = vld [vmem:[#allocation5 + $0xf4] sm:$0xf]
        %v726 = vld [vmem:[#allocation5 + $0xf8] sm:$0xf]
        %v727 = vld [vmem:[#allocation5 + $0xfc] sm:$0xf]
        %v728 = vld [vmem:[%s4] sm:$0x1]
        %v730 = vlaneseq
        %v731 = vshrl.u32 %v730, 7
        %v732 = vsub.s32 0, %v731
        %v733 = vrot.slane %v728, %v732
        %v799 = vunpack.c.l.b16 %v664
        %v800 = vunpack.c.l.b16 %v665
        %v801 = vunpack.c.l.b16 %v666
        %v802 = vunpack.c.l.b16 %v667
        %v803 = vunpack.c.l.b16 %v668
        %v804 = vunpack.c.l.b16 %v669
        %v805 = vunpack.c.l.b16 %v670
        %v806 = vunpack.c.l.b16 %v671
        %v807 = vunpack.c.l.b16 %v672
        %v808 = vunpack.c.l.b16 %v673
        %v809 = vunpack.c.l.b16 %v674
        %v810 = vunpack.c.l.b16 %v675
        %v811 = vunpack.c.l.b16 %v676
        %v812 = vunpack.c.l.b16 %v677
        %v813 = vunpack.c.l.b16 %v678
        %v814 = vunpack.c.l.b16 %v679
        %v815 = vunpack.c.l.b16 %v680
        %v816 = vunpack.c.l.b16 %v681
        %v817 = vunpack.c.l.b16 %v682
        %v818 = vunpack.c.l.b16 %v683
        %v819 = vunpack.c.l.b16 %v684
        %v820 = vunpack.c.l.b16 %v685
        %v821 = vunpack.c.l.b16 %v686
        %v822 = vunpack.c.l.b16 %v687
        %v823 = vunpack.c.l.b16 %v688
        %v824 = vunpack.c.l.b16 %v689
        %v825 = vunpack.c.l.b16 %v690
        %v826 = vunpack.c.l.b16 %v691
        %v827 = vunpack.c.l.b16 %v692
        %v828 = vunpack.c.l.b16 %v693
        %v829 = vunpack.c.l.b16 %v694
        %v830 = vunpack.c.l.b16 %v695
        %v831 = vunpack.c.l.b16 %v696
        %v832 = vunpack.c.l.b16 %v697
        %v833 = vunpack.c.l.b16 %v698
        %v834 = vunpack.c.l.b16 %v699
        %v835 = vunpack.c.l.b16 %v700
        %v836 = vunpack.c.l.b16 %v701
        %v837 = vunpack.c.l.b16 %v702
        %v838 = vunpack.c.l.b16 %v703
        %v839 = vunpack.c.l.b16 %v704
        %v840 = vunpack.c.l.b16 %v705
        %v841 = vunpack.c.l.b16 %v706
        %v842 = vunpack.c.l.b16 %v707
        %v843 = vunpack.c.l.b16 %v708
        %v844 = vunpack.c.l.b16 %v709
        %v845 = vunpack.c.l.b16 %v710
        %v846 = vunpack.c.l.b16 %v711
        %v847 = vunpack.c.l.b16 %v712
        %v848 = vunpack.c.l.b16 %v713
        %v849 = vunpack.c.l.b16 %v714
        %v850 = vunpack.c.l.b16 %v715
        %v851 = vunpack.c.l.b16 %v716
        %v852 = vunpack.c.l.b16 %v717
        %v853 = vunpack.c.l.b16 %v718
        %v854 = vunpack.c.l.b16 %v719
        %v855 = vunpack.c.l.b16 %v720
        %v856 = vunpack.c.l.b16 %v721
        %v857 = vunpack.c.l.b16 %v722
        %v858 = vunpack.c.l.b16 %v723
        %v859 = vunpack.c.l.b16 %v724
        %v860 = vunpack.c.l.b16 %v725
        %v861 = vunpack.c.l.b16 %v726
        %v862 = vunpack.c.l.b16 %v727
        %v863 = vpack.c.b16 %v800, %v799
        %v864 = vpack.c.b16 %v802, %v801
        %v865 = vpack.c.b16 %v804, %v803
        %v866 = vpack.c.b16 %v806, %v805
        %v867 = vpack.c.b16 %v808, %v807
        %v868 = vpack.c.b16 %v810, %v809
        %v869 = vpack.c.b16 %v812, %v811
        %v870 = vpack.c.b16 %v814, %v813
        %v871 = vpack.c.b16 %v816, %v815
        %v872 = vpack.c.b16 %v818, %v817
        %v873 = vpack.c.b16 %v820, %v819
        %v874 = vpack.c.b16 %v822, %v821
        %v875 = vpack.c.b16 %v824, %v823
        %v876 = vpack.c.b16 %v826, %v825
        %v877 = vpack.c.b16 %v828, %v827
        %v878 = vpack.c.b16 %v830, %v829
        %v879 = vpack.c.b16 %v832, %v831
        %v880 = vpack.c.b16 %v834, %v833
        %v881 = vpack.c.b16 %v836, %v835
        %v882 = vpack.c.b16 %v838, %v837
        %v883 = vpack.c.b16 %v840, %v839
        %v884 = vpack.c.b16 %v842, %v841
        %v885 = vpack.c.b16 %v844, %v843
        %v886 = vpack.c.b16 %v846, %v845
        %v887 = vpack.c.b16 %v848, %v847
        %v888 = vpack.c.b16 %v850, %v849
        %v889 = vpack.c.b16 %v852, %v851
        %v890 = vpack.c.b16 %v854, %v853
        %v891 = vpack.c.b16 %v856, %v855
        %v892 = vpack.c.b16 %v858, %v857
        %v893 = vpack.c.b16 %v860, %v859
        %v894 = vpack.c.b16 %v862, %v861
        %927 = vmatprep.subr.bf16.mxu0 0
        %928 = vmatpush1.bf16.msra.mxu0 %v870
        %929 = vmatprep.subr.bf16.mxu0 0
        %930 = vmatpush1.bf16.msra.mxu0 %v869
        %931 = vmatprep.subr.bf16.mxu0 0
        %932 = vmatpush1.bf16.msra.mxu0 %v868
        %933 = vmatprep.subr.bf16.mxu0 0
        %934 = vmatpush1.bf16.msra.mxu0 %v867
        %935 = vmatprep.subr.bf16.mxu0 0
        %936 = vmatpush1.bf16.msra.mxu0 %v866
        %937 = vmatprep.subr.bf16.mxu0 0
        %938 = vmatpush1.bf16.msra.mxu0 %v865
        %939 = vmatprep.subr.bf16.mxu0 0
        %940 = vmatpush1.bf16.msra.mxu0 %v864
        %941 = vmatprep.subr.bf16.mxu0 0
        %942 = vmatpush1.bf16.msra.mxu0 %v863
        %943 = vmatprep.subr.bf16.mxu0 0
        %944 = vmatpush2.bf16.msra.mxu0 %v878
        %945 = vmatprep.subr.bf16.mxu0 0
        %946 = vmatpush2.bf16.msra.mxu0 %v877
        %947 = vmatprep.subr.bf16.mxu0 0
        %948 = vmatpush2.bf16.msra.mxu0 %v876
        %949 = vmatprep.subr.bf16.mxu0 0
        %950 = vmatpush2.bf16.msra.mxu0 %v875
        %951 = vmatprep.subr.bf16.mxu0 0
        %952 = vmatpush2.bf16.msra.mxu0 %v874
        %953 = vmatprep.subr.bf16.mxu0 0
        %954 = vmatpush2.bf16.msra.mxu0 %v873
        %955 = vmatprep.subr.bf16.mxu0 0
        %956 = vmatpush2.bf16.msra.mxu0 %v872
        %957 = vmatprep.subr.bf16.mxu0 0
        %958 = vmatpush2.bf16.msra.mxu0 %v871
        %959 = vmatprep.mubr.bf16.mxu0 %v661
        %960 = vmatmul.mubr.bf16.gmra.mxu0 %v660
        %v961 = vpop.f32.mrf.mxu0
        %v962 = vadd.f32 %v733, %v961
        %v963 = vpop.f32.mrf.mxu0
        %v964 = vpop.f32.mrf.mxu0
        %v965 = vpop.f32.mrf.mxu0
        %966 = vdwg.mxu0
        %967 = vmatprep.subr.bf16.mxu0 0
        %968 = vmatpush1.bf16.msra.mxu0 %v886
        %969 = vmatprep.subr.bf16.mxu0 0
        %970 = vmatpush1.bf16.msra.mxu0 %v885
        %971 = vmatprep.subr.bf16.mxu0 0
        %972 = vmatpush1.bf16.msra.mxu0 %v884
        %973 = vmatprep.subr.bf16.mxu0 0
        %974 = vmatpush1.bf16.msra.mxu0 %v883
        %975 = vmatprep.subr.bf16.mxu0 0
        %976 = vmatpush1.bf16.msra.mxu0 %v882
        %977 = vmatprep.subr.bf16.mxu0 0
        %978 = vmatpush1.bf16.msra.mxu0 %v881
        %979 = vmatprep.subr.bf16.mxu0 0
        %980 = vmatpush1.bf16.msra.mxu0 %v880
        %981 = vmatprep.subr.bf16.mxu0 0
        %982 = vmatpush1.bf16.msra.mxu0 %v879
        %983 = vmatprep.subr.bf16.mxu0 0
        %984 = vmatpush2.bf16.msra.mxu0 %v894
        %985 = vmatprep.subr.bf16.mxu0 0
        %986 = vmatpush2.bf16.msra.mxu0 %v893
        %987 = vmatprep.subr.bf16.mxu0 0
        %988 = vmatpush2.bf16.msra.mxu0 %v892
        %989 = vmatprep.subr.bf16.mxu0 0
        %990 = vmatpush2.bf16.msra.mxu0 %v891
        %991 = vmatprep.subr.bf16.mxu0 0
        %992 = vmatpush2.bf16.msra.mxu0 %v890
        %993 = vmatprep.subr.bf16.mxu0 0
        %994 = vmatpush2.bf16.msra.mxu0 %v889
        %995 = vmatprep.subr.bf16.mxu0 0
        %996 = vmatpush2.bf16.msra.mxu0 %v888
        %997 = vmatprep.subr.bf16.mxu0 0
        %998 = vmatpush2.bf16.msra.mxu0 %v887
        %999 = vmatprep.mubr.bf16.mxu0 %v663
        %1000 = vmatmul.mubr.bf16.gmra.mxu0 %v662
        %v1001 = vpop.f32.mrf.mxu0
        %v1002 = vadd.f32 %v962, %v1001
        %v1003 = vpop.f32.mrf.mxu0
        %v1004 = vpop.f32.mrf.mxu0
        %v1005 = vpop.f32.mrf.mxu0
        %1006 = vdwg.mxu0
        %v1007 = vmax.f32 %v1002, 0.0
        %v1008 = vpack.c.bf16 %v1007, %v1007
        %v1009 = vld [vmem:[%s5] sm:$0xf]
        %v1010 = vld [vmem:[%s5 + $0x4] sm:$0xf]
        %v1011 = vld [vmem:[%s5 + $0x8] sm:$0xf]
        %v1012 = vld [vmem:[%s5 + $0xc] sm:$0xf]
        %v1013 = vld [vmem:[%s5 + $0x10] sm:$0xf]
        %v1014 = vld [vmem:[%s5 + $0x14] sm:$0xf]
        %v1015 = vld [vmem:[%s5 + $0x18] sm:$0xf]
        %v1016 = vld [vmem:[%s5 + $0x1c] sm:$0xf]
        %v1017 = vld [vmem:[%s5 + $0x20] sm:$0xf]
        %v1018 = vld [vmem:[%s5 + $0x24] sm:$0xf]
        %v1019 = vld [vmem:[%s5 + $0x28] sm:$0xf]
        %v1020 = vld [vmem:[%s5 + $0x2c] sm:$0xf]
        %v1021 = vld [vmem:[%s5 + $0x30] sm:$0xf]
        %v1022 = vld [vmem:[%s5 + $0x34] sm:$0xf]
        %v1023 = vld [vmem:[%s5 + $0x38] sm:$0xf]
        %v1024 = vld [vmem:[%s5 + $0x3c] sm:$0xf]
        %v1025 = vld [vmem:[%s6] sm:$0x1]
        %v1027 = vlaneseq
        %v1028 = vshrl.u32 %v1027, 7
        %v1029 = vsub.s32 0, %v1028
        %v1030 = vrot.slane %v1025, %v1029
        %v1048 = vunpack.c.l.b16 %v1009
        %v1049 = vunpack.c.l.b16 %v1010
        %v1050 = vunpack.c.l.b16 %v1011
        %v1051 = vunpack.c.l.b16 %v1012
        %v1052 = vunpack.c.l.b16 %v1013
        %v1053 = vunpack.c.l.b16 %v1014
        %v1054 = vunpack.c.l.b16 %v1015
        %v1055 = vunpack.c.l.b16 %v1016
        %v1056 = vunpack.c.l.b16 %v1017
        %v1057 = vunpack.c.l.b16 %v1018
        %v1058 = vunpack.c.l.b16 %v1019
        %v1059 = vunpack.c.l.b16 %v1020
        %v1060 = vunpack.c.l.b16 %v1021
        %v1061 = vunpack.c.l.b16 %v1022
        %v1062 = vunpack.c.l.b16 %v1023
        %v1063 = vunpack.c.l.b16 %v1024
        %v1064 = vpack.c.b16 %v1049, %v1048
        %v1065 = vpack.c.b16 %v1051, %v1050
        %v1066 = vpack.c.b16 %v1053, %v1052
        %v1067 = vpack.c.b16 %v1055, %v1054
        %v1068 = vpack.c.b16 %v1057, %v1056
        %v1069 = vpack.c.b16 %v1059, %v1058
        %v1070 = vpack.c.b16 %v1061, %v1060
        %v1071 = vpack.c.b16 %v1063, %v1062
        %1080 = vmatprep.subr.bf16.mxu0 0
        %1081 = vmatpush1.bf16.msra.mxu0 %v1071
        %1082 = vmatprep.subr.bf16.mxu0 0
        %1083 = vmatpush1.bf16.msra.mxu0 %v1070
        %1084 = vmatprep.subr.bf16.mxu0 0
        %1085 = vmatpush1.bf16.msra.mxu0 %v1069
        %1086 = vmatprep.subr.bf16.mxu0 0
        %1087 = vmatpush1.bf16.msra.mxu0 %v1068
        %1088 = vmatprep.subr.bf16.mxu0 0
        %1089 = vmatpush1.bf16.msra.mxu0 %v1067
        %1090 = vmatprep.subr.bf16.mxu0 0
        %1091 = vmatpush1.bf16.msra.mxu0 %v1066
        %1092 = vmatprep.subr.bf16.mxu0 0
        %1093 = vmatpush1.bf16.msra.mxu0 %v1065
        %1094 = vmatprep.subr.bf16.mxu0 0
        %1095 = vmatpush1.bf16.msra.mxu0 %v1064
        %1096 = vmatprep.subr.bf16.mxu0 0
        %1097 = vmatpush2.bf16.msra.mxu0 0
        %1098 = vmatprep.subr.bf16.mxu0 0
        %1099 = vmatpush2.bf16.msra.mxu0 0
        %1100 = vmatprep.subr.bf16.mxu0 0
        %1101 = vmatpush2.bf16.msra.mxu0 0
        %1102 = vmatprep.subr.bf16.mxu0 0
        %1103 = vmatpush2.bf16.msra.mxu0 0
        %1104 = vmatprep.subr.bf16.mxu0 0
        %1105 = vmatpush2.bf16.msra.mxu0 0
        %1106 = vmatprep.subr.bf16.mxu0 0
        %1107 = vmatpush2.bf16.msra.mxu0 0
        %1108 = vmatprep.subr.bf16.mxu0 0
        %1109 = vmatpush2.bf16.msra.mxu0 0
        %1110 = vmatprep.subr.bf16.mxu0 0
        %1111 = vmatpush2.bf16.msra.mxu0 0
        %1112 = vmatprep.mubr.bf16.mxu0 0
        %1113 = vmatmul.mubr.bf16.gmra.mxu0 %v1008
        %v1114 = vpop.f32.mrf.mxu0
        %v1115 = vadd.f32 %v1030, %v1114
        %v1116 = vpop.f32.mrf.mxu0
        %v1117 = vpop.f32.mrf.mxu0
        %v1118 = vpop.f32.mrf.mxu0
        %1119 = vdwg.mxu0
        %v1120 = vmax.f32 %v1115, 0.0
        %v1121 = vpack.c.bf16 %v1120, %v1120
        %v1122 = vld [vmem:[%s7] sm:$0xf]
        %v1123 = vld [vmem:[%s7 + $0x4] sm:$0xf]
        %v1124 = vld [vmem:[%s7 + $0x8] sm:$0xf]
        %v1125 = vld [vmem:[%s7 + $0xc] sm:$0xf]
        %v1126 = vld [vmem:[%s7 + $0x10] sm:$0xf]
        %v1127 = vld [vmem:[%s7 + $0x14] sm:$0xf]
        %v1128 = vld [vmem:[%s7 + $0x18] sm:$0xf]
        %v1129 = vld [vmem:[%s7 + $0x1c] sm:$0xf]
        %v1130 = vld [vmem:[%s8] sm:$0x1]
        %v1132 = vlaneseq
        %v1133 = vshrl.u32 %v1132, 7
        %v1134 = vsub.s32 0, %v1133
        %v1135 = vrot.slane %v1130, %v1134
        %v1145 = vunpack.c.l.b16 %v1122
        %v1146 = vunpack.c.l.b16 %v1123
        %v1147 = vunpack.c.l.b16 %v1124
        %v1148 = vunpack.c.l.b16 %v1125
        %v1149 = vunpack.c.l.b16 %v1126
        %v1150 = vunpack.c.l.b16 %v1127
        %v1151 = vunpack.c.l.b16 %v1128
        %v1152 = vunpack.c.l.b16 %v1129
        %v1153 = vpack.c.b16 %v1146, %v1145
        %v1154 = vpack.c.b16 %v1148, %v1147
        %v1155 = vpack.c.b16 %v1150, %v1149
        %v1156 = vpack.c.b16 %v1152, %v1151
        %vm1161 = vcmask 523264
        %v1163 = vsel %vm1161, %v1121, 0
        %1165 = vmatprep.subr.bf16.mxu0 0
        %1166 = vmatpush1.bf16.msra.mxu0 0
        %1167 = vmatprep.subr.bf16.mxu0 0
        %1168 = vmatpush1.bf16.msra.mxu0 0
        %1169 = vmatprep.subr.bf16.mxu0 0
        %1170 = vmatpush1.bf16.msra.mxu0 0
        %1171 = vmatprep.subr.bf16.mxu0 0
        %1172 = vmatpush1.bf16.msra.mxu0 0
        %1173 = vmatprep.subr.bf16.mxu0 0
        %1174 = vmatpush1.bf16.msra.mxu0 %v1156
        %1175 = vmatprep.subr.bf16.mxu0 0
        %1176 = vmatpush1.bf16.msra.mxu0 %v1155
        %1177 = vmatprep.subr.bf16.mxu0 0
        %1178 = vmatpush1.bf16.msra.mxu0 %v1154
        %1179 = vmatprep.subr.bf16.mxu0 0
        %1180 = vmatpush1.bf16.msra.mxu0 %v1153
        %1181 = vmatprep.subr.bf16.mxu0 0
        %1182 = vmatpush2.bf16.msra.mxu0 0
        %1183 = vmatprep.subr.bf16.mxu0 0
        %1184 = vmatpush2.bf16.msra.mxu0 0
        %1185 = vmatprep.subr.bf16.mxu0 0
        %1186 = vmatpush2.bf16.msra.mxu0 0
        %1187 = vmatprep.subr.bf16.mxu0 0
        %1188 = vmatpush2.bf16.msra.mxu0 0
        %1189 = vmatprep.subr.bf16.mxu0 0
        %1190 = vmatpush2.bf16.msra.mxu0 0
        %1191 = vmatprep.subr.bf16.mxu0 0
        %1192 = vmatpush2.bf16.msra.mxu0 0
        %1193 = vmatprep.subr.bf16.mxu0 0
        %1194 = vmatpush2.bf16.msra.mxu0 0
        %1195 = vmatprep.subr.bf16.mxu0 0
        %1196 = vmatpush2.bf16.msra.mxu0 0
        %1197 = vmatprep.mubr.bf16.mxu0 0
        %1198 = vmatmul.mubr.bf16.gmra.mxu0 %v1163
        %v1199 = vpop.f32.mrf.mxu0
        %v1200 = vadd.f32 %v1135, %v1199
        %v1201 = vpop.f32.mrf.mxu0
        %v1202 = vpop.f32.mrf.mxu0
        %v1203 = vpop.f32.mrf.mxu0
        %1204 = vdwg.mxu0
        %1205 = vst [vmem:[%s353] sm:$0xff] %v1200
        %s1206 = sand.u32 %s227, 1
        %s1207 = scalar_lea.sflag [#allocation4], %s1206
        %s1208 = sand.u32 %s227, 1
        %s1209 = smul.addr %s1208, 8
        %s1210 = scalar_lea.vmem [#allocation7], %s1209
        // Predicated region
        $region65: #{tpu_custom_call.1} parent=55 // pred_check
          %p1211 = pneg %p237
        $region66: #{tpu_custom_call.1} parent=55 // pred_check_branch
          %1213 = sbr.rel (%p1211) target = $region68
        $region67: #{tpu_custom_call.1} parent=55 // pred_region
          %s1215 = ssub.s32 128, 128
          %1216 = vsyncadd %s1207, %s1215
          %s1217 = smul.addr %s25, 128
          %s1218 = scalar_lea.hbm %s9, %s1217
          %s1220 = sshll.u32 %s1210, 4
          %s1221 = int_to_ptr.vmem [resolvable:$true] %s1220
          %1223 = dma.vmem_to_hbm [thread:$0]  %s1221, 128, %s1218, %s1207
        $region68: #{tpu_custom_call.1} parent=55 // pred_fallthru
          _
      $region56: #{tpu_custom_call.1} parent=5 // pred_fallthru
        _
      %p1224 = scmp.le.s32.totalorder 2, %s20
      // Predicated region
      $region69: #{tpu_custom_call.1} parent=5 // pred_check
        %p1225 = pneg %p1224
      $region70: #{tpu_custom_call.1} parent=5 // pred_check_branch
        %1227 = sbr.rel (%p1225) target = $region72
      $region71: #{tpu_custom_call.1} parent=5 // pred_region
        %s1228 = ssub.s32 %s20, 2
        // Predicated region
        $region73: #{tpu_custom_call.1} parent=71 // pred_check
          %p1229 = pneg %p243
        $region74: #{tpu_custom_call.1} parent=71 // pred_check_branch
          %1231 = sbr.rel (%p1229) target = $region76
        $region75: #{tpu_custom_call.1} parent=71 // pred_region
          %s1232 = sand.u32 %s228, 1
          %s1233 = scalar_lea.sflag [#allocation4], %s1232
          %s1234 = sand.u32 %s228, 1
          %s1235 = smul.addr %s1234, 8
          %s1236 = scalar_lea.vmem [#allocation7], %s1235
          %1237 = dma.done %s1233, 128
        $region76: #{tpu_custom_call.1} parent=71 // pred_fallthru
          _
      $region72: #{tpu_custom_call.1} parent=5 // pred_fallthru
        _
    $region6: #{tpu_custom_call.1} parent=1 // loop_footer
      %s24 = sadd.s32 1, %s20
    $region7: #{tpu_custom_call.1} parent=1 // loop_footer_branch
      %19 = sbr.rel target = $region3
    $region8: #{tpu_custom_call.1} parent=1 // loop_exit
      _
    %1238 = vsyncpa [#allocation3], 1
    %s1239 = scalar_lea.sflag [#allocation3], 1
    %1240 = vsyncpa %s1239, 1
    %1241 = vsyncpa [#allocation6], 1
    %1242 = vsyncpa [#allocation4], 1
    %s1243 = scalar_lea.sflag [#allocation4], 1
    %1244 = vsyncpa %s1243, 1

</llo_original>
